<compile_context>
chip_gen: v5e
topology: v5e:2x2
jax: 0.10.0
libtpu: 0.0.40
codegen_flags: <defaults>
</compile_context>

<pallas_src>
import jax
import jax.numpy as jnp
from jax import lax
from jax.experimental import pallas as pl
from jax.experimental.pallas import tpu as pltpu


def _round_up(a, b):
    return -(-a // b) * b


def norm_coord_ln(coords, eps=1e-6, tm=8192):
    """Pallas implementation of NormCoordLN.forward.

    coords: float array of shape (..., V, D). Returns same shape/dtype.
    """
    orig_shape = coords.shape
    orig_dtype = coords.dtype
    V, D = orig_shape[-2], orig_shape[-1]
    lead = orig_shape[:-2]
    M = 1
    for s in lead:
        M *= s
    if M == 0 or V == 0 or D == 0:
        return coords  # empty tensor: nothing to normalize

    VD = V * D
    eps_f = float(eps)
    d_f = float(D)

    # Free (contiguous, row-major) reshape: no HBM copy.
    x2d = coords.reshape(M, VD)

    # Block-diagonal group-sum matrix: B[i, j] = 1 iff i//D == j//D.
    # sq @ B replicates each vector's squared norm across its D lanes.
    B = jnp.kron(jnp.eye(V, dtype=jnp.float32),
                 jnp.ones((D, D), dtype=jnp.float32))

    # Row tile: multiple of 8 sublanes, as large as requested, never larger
    # than (8-rounded) M.  Prefer >= 2 grid steps so v7x's two TensorCores
    # both get work.  A trailing partial block (when tm does not divide M) is
    # handled by Pallas: OOB reads are row-local and OOB writes are dropped.
    SUB = 8
    tm_req = max(SUB, (int(tm) // SUB) * SUB)
    tm_eff = min(tm_req, _round_up(M, SUB))
    if pl.cdiv(M, tm_eff) < 2 and M >= 2 * SUB:
        tm_eff = _round_up(-(-M // 2), SUB)
    grid = (pl.cdiv(M, tm_eff),)

    def kernel(x_ref, b_ref, o_ref):
        x = x_ref[...].astype(jnp.float32)                         # (TM, V*D)
        sq = x * x
        # Per-vector squared L2 norm replicated across that vector's D lanes
        # (tiny MXU matmul).  Only used for the nonzero-mask threshold.
        vn = jnp.dot(sq, b_ref[...],
                     preferred_element_type=jnp.float32) + eps_f   # (TM, V*D)
        mask = vn > 2.0 * eps_f                                    # bool select
        # Exact masked statistics straight from sq (f32 VPU/XLU work):
        #   s1   = sum_v mask_v * ||x_v||^2      (per row)
        #   cntD = D * sum_v mask_v
        s1 = jnp.sum(jnp.where(mask, sq, 0.0), axis=-1, keepdims=True)
        cntD = jnp.sum(jnp.where(mask, 1.0, 0.0), axis=-1, keepdims=True)
        # mean = sum_v(vn_v*mask_v) / (eps + sum_v mask_v)
        #      = (D*s1 + eps*cntD) / (D*eps + cntD)
        mean = (d_f * s1 + eps_f * cntD) * pl.reciprocal(
            d_f * eps_f + cntD, approx=False)
        inv = lax.rsqrt(mean + eps_f)                              # (TM, 1)
        o_ref[...] = jnp.where(mask, x * inv, 0.0).astype(o_ref.dtype)

    itemsize = jnp.dtype(orig_dtype).itemsize
    cost = pl.CostEstimate(
        flops=int(M * VD * (2 * VD + 8)),
        transcendentals=int(2 * M),
        bytes_accessed=int(2 * M * VD * itemsize + VD * VD * 4),
    )

    out2d = pl.pallas_call(
        kernel,
        out_shape=jax.ShapeDtypeStruct((M, VD), orig_dtype),
        grid_spec=pltpu.PrefetchScalarGridSpec(
            num_scalar_prefetch=0,
            grid=grid,
            in_specs=[
                pl.BlockSpec((tm_eff, VD), lambda i: (i, 0)),
                pl.BlockSpec((VD, VD), lambda i: (0, 0)),
            ],
            out_specs=pl.BlockSpec((tm_eff, VD), lambda i: (i, 0)),
        ),
        compiler_params=pltpu.CompilerParams(
            dimension_semantics=("parallel",),
            # ~4 MiB/buffer at tm=8192 (f32): in+out double-buffering plus the
            # matmul temporaries stays well under 48 MiB, which is safe on
            # v5e/v6e (128 MiB VMEM) and v7x (64 MiB per TensorCore).
            vmem_limit_bytes=48 * 1024 * 1024,
        ),
        cost_estimate=cost,
    )(x2d, B)

    # Free reshape back to the original (..., V, D) layout.
    return out2d.reshape(orig_shape)


def _reference(coords, eps=1e-6):
    # Pure-JAX reference mirroring the PyTorch module.
    vn = jnp.sum(jnp.square(coords), axis=-1, keepdims=True) + eps
    nonzero_mask = vn > 2 * eps
    vn = jnp.sum(vn * nonzero_mask, axis=-2, keepdims=True) / (
        eps + jnp.sum(nonzero_mask, axis=-2, keepdims=True))
    vn = jnp.sqrt(vn + eps)
    return nonzero_mask * (coords / vn)


if __name__ == "__main__":
    key = jax.random.PRNGKey(0)
    # (batch=2, seq=8, vec_channels=16, coord_dim=3)
    coords = jax.random.normal(key, (2, 8, 16, 3), dtype=jnp.float32)
    # Zero out a few vectors so nonzero_mask takes both values.
    coords = coords.at[0, 0, :4, :].set(0.0)

    out = norm_coord_ln(coords, eps=1e-6)
    out = jax.block_until_ready(out)

    ref = _reference(coords, eps=1e-6)
    assert out.shape == coords.shape and out.dtype == coords.dtype
    assert jnp.allclose(out, ref, atol=1e-5, rtol=1e-5)

    # Awkward (non-multiple-of-8) M with a small tile: exercises multiple grid
    # steps plus the Pallas-handled partial trailing block (no jnp.pad copy).
    coords2 = jax.random.normal(jax.random.PRNGKey(1), (3, 37, 16, 3),
                                dtype=jnp.float32)
    coords2 = coords2.at[1, 5, :7, :].set(0.0)
    out2 = jax.block_until_ready(norm_coord_ln(coords2, eps=1e-6, tm=32))
    assert jnp.allclose(out2, _reference(coords2, eps=1e-6),
                        atol=1e-5, rtol=1e-5)

    print("KERNEL_OK")
</pallas_src>

<mosaic_0001>
module attributes {stable_mosaic.version = 11 : i64} {
  func.func @kernel(%arg0: i32, %arg1: memref<8x48xf32, #tpu.memory_space<vmem>>, %arg2: memref<48x48xf32, #tpu.memory_space<vmem>>, %arg3: memref<8x48xf32, #tpu.memory_space<vmem>>) attributes {dimension_semantics = [#tpu.dimension_semantics<parallel>], iteration_bounds = array<i64: 2>, scalar_prefetch = 0 : i64, scratch_operands = 0 : i64, tpu.core_type = #tpu.core_type<tc>, window_params = [{transform_indices = @transform_0, window_bounds = array<i64: 8, 48>}, {pipeline_mode = #tpu.pipeline_mode<synchronous>, transform_indices = @transform_1, window_bounds = array<i64: 48, 48>}, {transform_indices = @transform_2, window_bounds = array<i64: 8, 48>}]} {
    %c0 = arith.constant 0 : index
    %c0_0 = arith.constant 0 : index
    %0 = vector.load %arg1[%c0, %c0_0] : memref<8x48xf32, #tpu.memory_space<vmem>>, vector<8x48xf32>
    %1 = arith.mulf %0, %0 : vector<8x48xf32>
    %c0_1 = arith.constant 0 : index
    %c0_2 = arith.constant 0 : index
    %2 = vector.load %arg2[%c0_1, %c0_2] : memref<48x48xf32, #tpu.memory_space<vmem>>, vector<48x48xf32>
    %cst = arith.constant dense<0.000000e+00> : vector<8x48xf32>
    %3 = tpu.matmul %1, %2, %cst {dimension_numbers = #tpu.dot_dimension_numbers<[1], [0], [0], [1], [0, 0, 1, 1], [], []>} : vector<8x48xf32>, vector<48x48xf32>, vector<8x48xf32> -> vector<8x48xf32>
    %cst_3 = arith.constant 9.99999997E-7 : f32
    %4 = vector.broadcast %cst_3 : f32 to vector<8x48xf32>
    %5 = arith.addf %3, %4 : vector<8x48xf32>
    %cst_4 = arith.constant 2.000000e-06 : f32
    %6 = vector.broadcast %cst_4 : f32 to vector<8x48xf32>
    %7 = arith.cmpf ogt, %5, %6 : vector<8x48xf32>
    %cst_5 = arith.constant 0.000000e+00 : f32
    %8 = vector.broadcast %cst_5 : f32 to vector<8x48xf32>
    %9 = arith.select %7, %1, %8 : vector<8x48xi1>, vector<8x48xf32>
    %cst_6 = arith.constant dense<0.000000e+00> : vector<8xf32>
    %10 = vector.multi_reduction <add>, %9, %cst_6 [1] : vector<8x48xf32> to vector<8xf32>
    %11 = vector.shape_cast %10 : vector<8xf32> to vector<8x1xf32>
    %cst_7 = arith.constant 1.000000e+00 : f32
    %cst_8 = arith.constant 0.000000e+00 : f32
    %12 = vector.broadcast %cst_7 : f32 to vector<8x48xf32>
    %13 = vector.broadcast %cst_8 : f32 to vector<8x48xf32>
    %14 = arith.select %7, %12, %13 : vector<8x48xi1>, vector<8x48xf32>
    %cst_9 = arith.constant dense<0.000000e+00> : vector<8xf32>
    %15 = vector.multi_reduction <add>, %14, %cst_9 [1] : vector<8x48xf32> to vector<8xf32>
    %16 = vector.shape_cast %15 : vector<8xf32> to vector<8x1xf32>
    %cst_10 = arith.constant 3.000000e+00 : f32
    %17 = vector.broadcast %cst_10 : f32 to vector<8x1xf32>
    %18 = arith.mulf %17, %11 : vector<8x1xf32>
    %cst_11 = arith.constant 9.99999997E-7 : f32
    %19 = vector.broadcast %cst_11 : f32 to vector<8x1xf32>
    %20 = arith.mulf %19, %16 : vector<8x1xf32>
    %21 = arith.addf %18, %20 : vector<8x1xf32>
    %cst_12 = arith.constant 3.000000e-06 : f32
    %22 = vector.broadcast %cst_12 : f32 to vector<8x1xf32>
    %23 = arith.addf %22, %16 : vector<8x1xf32>
    %24 = tpu.reciprocal %23 : vector<8x1xf32> -> vector<8x1xf32>
    %25 = arith.mulf %21, %24 : vector<8x1xf32>
    %cst_13 = arith.constant 9.99999997E-7 : f32
    %26 = vector.broadcast %cst_13 : f32 to vector<8x1xf32>
    %27 = arith.addf %25, %26 : vector<8x1xf32>
    %28 = math.rsqrt %27 : vector<8x1xf32>
    %29 = vector.broadcast %28 : vector<8x1xf32> to vector<8x48xf32>
    %30 = arith.mulf %0, %29 : vector<8x48xf32>
    %cst_14 = arith.constant 0.000000e+00 : f32
    %31 = vector.broadcast %cst_14 : f32 to vector<8x48xf32>
    %32 = arith.select %7, %30, %31 : vector<8x48xi1>, vector<8x48xf32>
    %c0_15 = arith.constant 0 : index
    %c0_16 = arith.constant 0 : index
    %33 = vector.load %arg3[%c0_15, %c0_16] : memref<8x48xf32, #tpu.memory_space<vmem>>, vector<8x48xf32>
    tpu.vector_store %arg3[%c0_15, %c0_16], %32 {strides = array<i32>} : memref<8x48xf32, #tpu.memory_space<vmem>>, vector<8x48xf32>,
    return
  }
  func.func @transform_0(%arg0: i32) -> (i32, i32) {
    %c0_i32 = arith.constant 0 : i32
    %c0_i32_0 = arith.constant 0 : i32
    return %arg0, %c0_i32 : i32, i32
  }
  func.func @transform_1(%arg0: i32) -> (i32, i32) {
    %c0_i32 = arith.constant 0 : i32
    %c0_i32_0 = arith.constant 0 : i32
    %c0_i32_1 = arith.constant 0 : i32
    return %c0_i32, %c0_i32_0 : i32, i32
  }
  func.func @transform_2(%arg0: i32) -> (i32, i32) {
    %c0_i32 = arith.constant 0 : i32
    %c0_i32_0 = arith.constant 0 : i32
    return %arg0, %c0_i32 : i32, i32
  }
}

</mosaic_0001>

<llo_original>
// kernel: tpu_custom_call.1
$region0: #{tpu_custom_call.1}
  #allocation0 [shape = 'u32[]', space=smem, size = 0x4, offset = 0x4, fixed_abs, tag = 'smem constant byte address 0x4 - core index']
  #allocation1 [shape = 'u32[72,128]{1,0:T(1,128)}', space=vmem, size = 0x9000, scoped, tag = 'internal scratch']
  %s0 = inlined_call_operand.hbm [shape: f32[16,48], index: 0, kind: input, shape index: {}]
  %s1 = inlined_call_operand.hbm [shape: f32[48,48], index: 1, kind: input, shape index: {}]
  %s2 = inlined_call_operand.hbm [shape: f32[16,48], index: 2, kind: output, shape index: {}]
  %s3 = sld [smem:[#allocation0]]
  $region49: #{tpu_custom_call.1} parent=0
    _
  %s5 = ssub.s32 1, %s3
  %s6 = scalar_select 0, %s5, %s3
  $region1: #{tpu_custom_call.1} parent=0
    #allocation2 [shape = 'u8[8192]{0}', space=vmem, size = 0x2000, scoped, tag = 'input window, operand 0']
    #allocation3 [shape = 's32[2]{0}', space=sflag, size = 0x8, scoped, tag = 'scoped memory for tpu_custom_call.1']
    #allocation4 [shape = 's32[2]{0}', space=sflag, size = 0x8, scoped, tag = 'scoped memory for tpu_custom_call.1']
    #allocation5 [shape = 'u8[24576]{0}', space=vmem, size = 0x6000, scoped, tag = 'input window, operand 1, single buffered']
    #allocation6 [shape = 's32[1]{0}', space=sflag, size = 0x4, scoped, tag = 'scoped memory for tpu_custom_call.1']
    #allocation7 [shape = 'u8[8192]{0}', space=vmem, size = 0x2000, scoped, tag = 'output window, operand 0']
    %7 = vsyncpa [#allocation3], 0
    %s8 = scalar_lea.sflag [#allocation3], 1
    %9 = vsyncpa %s8, 0
    %10 = vsyncpa [#allocation6], 0
    %11 = vsyncpa [#allocation4], 0
    %s12 = scalar_lea.sflag [#allocation4], 1
    %13 = vsyncpa %s12, 0
    loop: start=0, step=1, limit=4
    $region2: #{tpu_custom_call.1} parent=1 // loop_pre_header
      _
    $region3: #{tpu_custom_call.1} parent=1 // loop_header
      %s15 = sphi 0, %s19
      %p16 = scmp.ge.s32.totalorder %s15, 4
      %s25 = sphi 0, %s27
      %s28 = sphi 0, %s25
      %s29 = sphi 0, %s28
      %s45 = sphi 0, %s29
      %s49 = sphi 0, %s49
      %s51 = sphi 0, %s49
      %s52 = sphi 0, %s51
      %s66 = sphi 0, %s52
      %s72 = sphi 0, %s74
      %s75 = sphi 0, %s72
      %s76 = sphi 0, %s75
      %s92 = sphi 0, %s76
    $region4: #{tpu_custom_call.1} parent=1 // loop_header_branch
      %18 = sbr.rel (%p16) target = $region8
    $region5: #{tpu_custom_call.1} parent=1 // loop_body
      %s20 = ssub.s32 %s15, 1
      %s21 = ssub.s32 %s15, 2
      %s22 = sadd.s32 %s15, 1
      %s23 = ssub.s32 %s15, %s22
      %p24 = scmp.eq.s32.totalorder %s23, 0
      %s26 = sadd.s32 %s25, 1
      %s27 = scalar_select %p24, %s25, %s26
      %p30 = pneg %p24
      %p31 = scmp.eq.s32.totalorder %s15, 1
      %p32 = por %p30, %p31
      %p33 = scmp.ne.s32.totalorder %s25, %s28
      %p34 = scmp.eq.s32.totalorder %s15, 0
      %p35 = por %p33, %p34
      %p36 = scmp.ne.s32.totalorder %s25, %s28
      %p37 = scmp.eq.s32.totalorder %s20, 1
      %p38 = por %p36, %p37
      %p39 = scmp.ne.s32.totalorder %s28, %s29
      %p40 = scmp.eq.s32.totalorder %s20, 0
      %p41 = por %p39, %p40
      %p42 = scmp.ne.s32.totalorder %s28, %s29
      %p43 = scmp.eq.s32.totalorder %s21, 1
      %p44 = por %p42, %p43
      %p46 = scmp.ne.s32.totalorder %s29, %s45
      %p47 = scmp.eq.s32.totalorder %s21, 0
      %p48 = por %p46, %p47
      %s50 = sadd.s32 %s49, 1
      %p53 = scmp.eq.s32.totalorder %s15, 1
      %p54 = scmp.ne.s32.totalorder %s49, %s51
      %p55 = scmp.eq.s32.totalorder %s15, 0
      %p56 = por %p54, %p55
      %p57 = scmp.ne.s32.totalorder %s49, %s51
      %p58 = scmp.eq.s32.totalorder %s20, 1
      %p59 = por %p57, %p58
      %p60 = scmp.ne.s32.totalorder %s51, %s52
      %p61 = scmp.eq.s32.totalorder %s20, 0
      %p62 = por %p60, %p61
      %p63 = scmp.ne.s32.totalorder %s51, %s52
      %p64 = scmp.eq.s32.totalorder %s21, 1
      %p65 = por %p63, %p64
      %p67 = scmp.ne.s32.totalorder %s52, %s66
      %p68 = scmp.eq.s32.totalorder %s21, 0
      %p69 = por %p67, %p68
      %s70 = ssub.s32 %s15, %s22
      %p71 = scmp.eq.s32.totalorder %s70, 0
      %s73 = sadd.s32 %s72, 1
      %s74 = scalar_select %p71, %s72, %s73
      %p77 = pneg %p71
      %p78 = scmp.eq.s32.totalorder %s15, 1
      %p79 = por %p77, %p78
      %p80 = scmp.ne.s32.totalorder %s72, %s75
      %p81 = scmp.eq.s32.totalorder %s15, 0
      %p82 = por %p80, %p81
      %p83 = scmp.ne.s32.totalorder %s72, %s75
      %p84 = scmp.eq.s32.totalorder %s20, 1
      %p85 = por %p83, %p84
      %p86 = scmp.ne.s32.totalorder %s75, %s76
      %p87 = scmp.eq.s32.totalorder %s20, 0
      %p88 = por %p86, %p87
      %p89 = scmp.ne.s32.totalorder %s75, %s76
      %p90 = scmp.eq.s32.totalorder %s21, 1
      %p91 = por %p89, %p90
      %p93 = scmp.ne.s32.totalorder %s76, %s92
      %p94 = scmp.eq.s32.totalorder %s21, 0
      %p95 = por %p93, %p94
      %p96 = scmp.le.s32.totalorder 1, %s15
      %p97 = scmp.lt.s32.totalorder %s15, 3
      %p98 = pnand %p96, %p97
      %p99 = pneg %p98
      // Predicated region
      $region9: #{tpu_custom_call.1} parent=5 // pred_check
        _
      $region10: #{tpu_custom_call.1} parent=5 // pred_check_branch
        %101 = sbr.rel (%p98) target = $region12
      $region11: #{tpu_custom_call.1} parent=5 // pred_region
        %s102 = ssub.s32 %s15, 1
        // Predicated region
        $region13: #{tpu_custom_call.1} parent=11 // pred_check
          %p103 = pneg %p62
        $region14: #{tpu_custom_call.1} parent=11 // pred_check_branch
          %105 = sbr.rel (%p103) target = $region16
        $region15: #{tpu_custom_call.1} parent=11 // pred_region
          %107 = vsyncadd [#allocation6], 0
          %s108 = sshll.u32 %s1, 4
          %s109 = int_to_ptr.hbm [resolvable:$true] %s108
          %s110 = sshll.u32 [#allocation5], 4
          %s111 = int_to_ptr.vmem [resolvable:$true] %s110
          %116 = dma.hbm_to_vmem [thread:$0]  %s109, 768, %s111, [#allocation6], 128, 128, 8
        $region16: #{tpu_custom_call.1} parent=11 // pred_fallthru
          _
      $region12: #{tpu_custom_call.1} parent=5 // pred_fallthru
        _
      %p117 = scmp.lt.s32.totalorder %s15, 2
      // Predicated region
      $region17: #{tpu_custom_call.1} parent=5 // pred_check
        %p118 = pneg %p117
      $region18: #{tpu_custom_call.1} parent=5 // pred_check_branch
        %120 = sbr.rel (%p118) target = $region20
      $region19: #{tpu_custom_call.1} parent=5 // pred_region
        // Predicated region
        $region21: #{tpu_custom_call.1} parent=19 // pred_check
          %p121 = pneg %p35
        $region22: #{tpu_custom_call.1} parent=19 // pred_check_branch
          %123 = sbr.rel (%p121) target = $region24
        $region23: #{tpu_custom_call.1} parent=19 // pred_region
          %s124 = sand.u32 %s25, 1
          %s125 = scalar_lea.sflag [#allocation3], %s124
          %s126 = sand.u32 %s25, 1
          %s127 = smul.addr %s126, 8
          %s128 = scalar_lea.vmem [#allocation2], %s127
          %130 = vsyncadd %s125, 0
          %s131 = smul.addr %s15, 8
          %s132 = scalar_lea.hbm %s0, %s131
          %s134 = sshll.u32 %s132, 4
          %s135 = int_to_ptr.hbm [resolvable:$true] %s134
          %s136 = sshll.u32 %s128, 4
          %s137 = int_to_ptr.vmem [resolvable:$true] %s136
          %139 = dma.hbm_to_vmem [thread:$0]  %s135, 128, %s137, %s125
        $region24: #{tpu_custom_call.1} parent=19 // pred_fallthru
          _
      $region20: #{tpu_custom_call.1} parent=5 // pred_fallthru
        _
      %p140 = scmp.le.s32.totalorder 1, %s15
      %p141 = scmp.lt.s32.totalorder %s15, 3
      %p142 = pnand %p140, %p141
      %p143 = pneg %p142
      // Predicated region
      $region25: #{tpu_custom_call.1} parent=5 // pred_check
        _
      $region26: #{tpu_custom_call.1} parent=5 // pred_check_branch
        %145 = sbr.rel (%p142) target = $region28
      $region27: #{tpu_custom_call.1} parent=5 // pred_region
        %s146 = ssub.s32 %s15, 1
        %s147 = sand.u32 %s28, 1
        %s148 = scalar_lea.sflag [#allocation3], %s147
        %s149 = sand.u32 %s28, 1
        %s150 = smul.addr %s149, 8
        %s151 = scalar_lea.vmem [#allocation2], %s150
        // Predicated region
        $region29: #{tpu_custom_call.1} parent=27 // pred_check
          %p152 = pneg %p41
        $region30: #{tpu_custom_call.1} parent=27 // pred_check_branch
          %154 = sbr.rel (%p152) target = $region32
        $region31: #{tpu_custom_call.1} parent=27 // pred_region
          %156 = dma.done %s148, 128
        $region32: #{tpu_custom_call.1} parent=27 // pred_fallthru
          _
        // Predicated region
        $region33: #{tpu_custom_call.1} parent=27 // pred_check
          %p157 = pneg %p62
        $region34: #{tpu_custom_call.1} parent=27 // pred_check_branch
          %159 = sbr.rel (%p157) target = $region36
        $region35: #{tpu_custom_call.1} parent=27 // pred_region
          %161 = dma.done [#allocation6], 768
        $region36: #{tpu_custom_call.1} parent=27 // pred_fallthru
          _
        %s162 = sand.u32 %s28, 1
        %s163 = scalar_lea.sflag [#allocation3], %s162
        %s164 = sand.u32 %s28, 1
        %s165 = smul.addr %s164, 8
        %s166 = scalar_lea.vmem [#allocation2], %s165
        %p167 = pneg %p41
        %p168 = pneg %p38
        %p169 = pneg %p62
        %p170 = pneg %p59
        %p171 = pneg %p88
        %p172 = pneg %p85
        %s173 = sand.u32 %s75, 1
        %s174 = scalar_lea.sflag [#allocation4], %s173
        %s175 = sand.u32 %s75, 1
        %s176 = smul.addr %s175, 8
        %s177 = scalar_lea.vmem [#allocation7], %s176
        %v178 = vld [vmem:[%s151] sm:$0xff]
        %v179 = vmul.f32 %v178, %v178
        %v180 = vld [vmem:[#allocation5] sm:$0xff]
        %v181 = vld [vmem:[#allocation5 + $0x8] sm:$0xff]
        %v182 = vld [vmem:[#allocation5 + $0x10] sm:$0xff]
        %v183 = vld [vmem:[#allocation5 + $0x18] sm:$0xff]
        %v184 = vld [vmem:[#allocation5 + $0x20] sm:$0xff]
        %v185 = vld [vmem:[#allocation5 + $0x28] sm:$0xff]
        %vm186 = vcmask 392192
        %v188 = vsel %vm186, %v179, 0
        %190 = vmatpush.msra.mxu0 0.0
        %191 = vmatpush.msra.mxu0 0.0
        %192 = vmatpush.msra.mxu0 0.0
        %193 = vmatpush.msra.mxu0 0.0
        %194 = vmatpush.msra.mxu0 0.0
        %195 = vmatpush.msra.mxu0 0.0
        %196 = vmatpush.msra.mxu0 0.0
        %197 = vmatpush.msra.mxu0 0.0
        %198 = vmatpush.msra.mxu0 0.0
        %199 = vmatpush.msra.mxu0 0.0
        %200 = vmatpush.msra.mxu0 %v185
        %201 = vmatpush.msra.mxu0 %v184
        %202 = vmatpush.msra.mxu0 %v183
        %203 = vmatpush.msra.mxu0 %v182
        %204 = vmatpush.msra.mxu0 %v181
        %205 = vmatpush.msra.mxu0 %v180
        %206 = vmatmul.f32.gmra.mxu0 %v188
        %v207 = vpop.f32.mrf.mxu0
        %v208 = vadd.f32 1e-06, %v207
        %209 = vdwg.mxu0
        %vm210 = vcmp.gt.f32.partialorder %v208, 2e-06
        %v211 = vsel %vm210, %v179, 0.0
        %v212 = vsel %vm186, %v211, 0.0
        %213 = vadd.xlane.f32.xlu0 %v212
        %v214 = vpop.xlane.xlu0 %213
        %v215 = vsel %vm210, 1.0, 0.0
        %v216 = vsel %vm186, %v215, 0.0
        %217 = vadd.xlane.f32.xlu0 %v216
        %v218 = vpop.xlane.xlu0 %217
        %v219 = vmul.f32 %v214, 3.0
        %v220 = vmul.f32 %v218, 1e-06
        %v221 = vadd.f32 %v219, %v220
        %v222 = vadd.f32 %v218, 3e-06
        %v223 = vrcp.pop %v222
        %v224 = vmul.f32 %v222, %v223
        %v225 = vsub.f32 1.0, %v224
        %v226 = vmul.f32 %v223, %v225
        %v227 = vadd.f32 %v223, %v226
        %vm228 = vweird.f32 %v222
        %vm229 = vweird.f32 %v223
        %vm230 = vmor %vm228, %vm229
        %v231 = vsel %vm230, %v223, %v227
        %v232 = vand.u32 2147483647, %v222
        %vm233 = vcmp.eq.f32.partialorder %v232, 8.507059e+37
        %v234 = vand.u32 %v222, 2147483648
        %v235 = vor.u32 1.1754944e-38, %v234
        %v236 = vsel %vm233, %v235, %v231
        %v237 = vmul.f32 %v221, %v236
        %v238 = vadd.f32 %v237, 1e-06
        %v239 = vrsqrt.pop %v238
        %v240 = vmul.f32 %v239, %v238
        %v241 = vmul.f32 %v240, %v239
        %v242 = vmul.f32 0.5, %v241
        %v243 = vsub.f32 1.5, %v242
        %v244 = vmul.f32 %v239, %v243
        %vm245 = vweird.f32 %v238
        %vm246 = vweird.f32 %v239
        %vm247 = vmor %vm245, %vm246
        %v248 = vsel %vm247, %v239, %v244
        %v249 = vmul.f32 %v178, %v248
        %v250 = vsel %vm210, %v249, 0.0
        %251 = vst.msk [vmem:[%s177] sm:$0xff] %vm186, %v250
        %s252 = sand.u32 %s75, 1
        %s253 = scalar_lea.sflag [#allocation4], %s252
        %s254 = sand.u32 %s75, 1
        %s255 = smul.addr %s254, 8
        %s256 = scalar_lea.vmem [#allocation7], %s255
        // Predicated region
        $region37: #{tpu_custom_call.1} parent=27 // pred_check
          %p257 = pneg %p85
        $region38: #{tpu_custom_call.1} parent=27 // pred_check_branch
          %259 = sbr.rel (%p257) target = $region40
        $region39: #{tpu_custom_call.1} parent=27 // pred_region
          %261 = vsyncadd %s253, 0
          %s262 = smul.addr %s20, 8
          %s263 = scalar_lea.hbm %s2, %s262
          %s265 = sshll.u32 %s256, 4
          %s266 = int_to_ptr.vmem [resolvable:$true] %s265
          %s267 = sshll.u32 %s263, 4
          %s268 = int_to_ptr.hbm [resolvable:$true] %s267
          %270 = dma.vmem_to_hbm [thread:$0]  %s266, 128, %s268, %s253
        $region40: #{tpu_custom_call.1} parent=27 // pred_fallthru
          _
      $region28: #{tpu_custom_call.1} parent=5 // pred_fallthru
        _
      %p271 = scmp.le.s32.totalorder 2, %s15
      // Predicated region
      $region41: #{tpu_custom_call.1} parent=5 // pred_check
        %p272 = pneg %p271
      $region42: #{tpu_custom_call.1} parent=5 // pred_check_branch
        %274 = sbr.rel (%p272) target = $region44
      $region43: #{tpu_custom_call.1} parent=5 // pred_region
        %s275 = ssub.s32 %s15, 2
        // Predicated region
        $region45: #{tpu_custom_call.1} parent=43 // pred_check
          %p276 = pneg %p91
        $region46: #{tpu_custom_call.1} parent=43 // pred_check_branch
          %278 = sbr.rel (%p276) target = $region48
        $region47: #{tpu_custom_call.1} parent=43 // pred_region
          %s279 = sand.u32 %s76, 1
          %s280 = scalar_lea.sflag [#allocation4], %s279
          %s281 = sand.u32 %s76, 1
          %s282 = smul.addr %s281, 8
          %s283 = scalar_lea.vmem [#allocation7], %s282
          %285 = dma.done %s280, 128
        $region48: #{tpu_custom_call.1} parent=43 // pred_fallthru
          _
      $region44: #{tpu_custom_call.1} parent=5 // pred_fallthru
        _
    $region6: #{tpu_custom_call.1} parent=1 // loop_footer
      %s19 = sadd.s32 1, %s15
    $region7: #{tpu_custom_call.1} parent=1 // loop_footer_branch
      %14 = sbr.rel target = $region3
    $region8: #{tpu_custom_call.1} parent=1 // loop_exit
      _
    %286 = vsyncpa [#allocation3], 1
    %s287 = scalar_lea.sflag [#allocation3], 1
    %288 = vsyncpa %s287, 1
    %289 = vsyncpa [#allocation6], 1
    %290 = vsyncpa [#allocation4], 1
    %s291 = scalar_lea.sflag [#allocation4], 1
    %292 = vsyncpa %s291, 1

</llo_original>
